<compile_context>
chip_gen: v6e
topology: v6e:2x2x1
jax: 0.10.0
libtpu: 0.0.40
codegen_flags: <defaults>
</compile_context>

<pallas_src>
import jax
import jax.numpy as jnp
from jax.experimental import pallas as pl
from jax.experimental.pallas import tpu as pltpu


LEAKY = 0.2


def _leaky_relu(x, slope=LEAKY):
    return jnp.where(x > 0, x, slope * x)


def _round_up(n, m):
    return ((n + m - 1) // m) * m


# ----------------------------- Pallas kernel -----------------------------

def disc_zz_kernel(z_ref, zp_ref, w1_ref, b1_ref, w2_ref, b2_ref, w3_ref, b3_ref,
                   h2_ref, logit_ref):
    tile_m = z_ref.shape[0]

    # Stack both halves along the sublane axis -> one MXU push per layer and one shared
    # f32 bias+LeakyReLU epilogue. bf16 cast happens here (no extra wrapper HBM pass).
    x = jnp.concatenate([z_ref[...], zp_ref[...]], axis=0).astype(jnp.bfloat16)

    h1 = jnp.dot(x, w1_ref[...], preferred_element_type=jnp.float32) + b1_ref[...]
    h1 = _leaky_relu(h1)
    h2 = jnp.dot(h1.astype(jnp.bfloat16), w2_ref[...],
                 preferred_element_type=jnp.float32) + b2_ref[...]
    h2 = _leaky_relu(h2)
    # Layer 3 has N=1: VPU multiply + lane reduction instead of a wasted MXU push.
    h3 = jnp.sum(h2 * w3_ref[...], axis=-1, keepdims=True) + b3_ref[...]
    h3 = _leaky_relu(h3)

    h2_ref[0] = h2[:tile_m].astype(h2_ref.dtype)       # z half
    h2_ref[1] = h2[tile_m:].astype(h2_ref.dtype)       # z_prime half
    logit_ref[0] = h3[:tile_m].astype(logit_ref.dtype)
    logit_ref[1] = h3[tile_m:].astype(logit_ref.dtype)


# ----------------------------- wrapper -----------------------------

def _choose_tile(B8, max_tile_m):
    """Largest multiple of 8 that divides B8, capped so the grid has >= 2 steps (v7x)."""
    if B8 < 16:
        return B8
    cap = min(max_tile_m, B8 // 2)
    best = 8
    t = 16
    while t <= cap:
        if B8 % t == 0:
            best = t
        t += 8
    return best


def discriminator_zz_forward(z, z_prime, params, *, max_tile_m=1024):
    """z, z_prime: (B, latent). Returns (logit (2B,), intermediate (2B, 32)), both f32."""
    B = z.shape[0]
    z = z.reshape(B, -1)              # z.view(z.shape[0], -1)
    z_prime = z_prime.reshape(B, -1)
    latent = z.shape[1]

    w1, b1, w2, b2, w3_row, b3 = params   # f32; w1/w2 are (in, out), w3_row is (1, 32)

    # Weights on the MXU path in bf16 (tiny arrays; cast cost is negligible).
    w1_bf = w1.astype(jnp.bfloat16)
    w2_bf = w2.astype(jnp.bfloat16)

    # Pad only when the batch is not 8-aligned; f32 inputs go straight to the kernel.
    B8 = _round_up(B, 8)
    if B8 != B:
        pad = ((0, B8 - B), (0, 0))
        z_in = jnp.pad(z, pad)
        zp_in = jnp.pad(z_prime, pad)
    else:
        z_in, zp_in = z, z_prime

    tile_m = _choose_tile(B8, max_tile_m)
    grid = (B8 // tile_m,)

    const = lambda i: (0, 0)   # weights/biases: same block every step -> DMA'd once

    h2_out, logit_out = pl.pallas_call(
        disc_zz_kernel,
        out_shape=(jax.ShapeDtypeStruct((2, B8, 32), jnp.float32),
                   jax.ShapeDtypeStruct((2, B8, 1), jnp.float32)),
        grid=grid,
        in_specs=[
            pl.BlockSpec((tile_m, latent), lambda i: (i, 0)),   # z tile (f32)
            pl.BlockSpec((tile_m, latent), lambda i: (i, 0)),   # z_prime tile (f32)
            pl.BlockSpec(w1_bf.shape, const),
            pl.BlockSpec(b1.shape, const),
            pl.BlockSpec(w2_bf.shape, const),
            pl.BlockSpec(b2.shape, const),
            pl.BlockSpec(w3_row.shape, const),
            pl.BlockSpec(b3.shape, const),
        ],
        out_specs=(
            pl.BlockSpec((2, tile_m, 32), lambda i: (0, i, 0)),
            pl.BlockSpec((2, tile_m, 1), lambda i: (0, i, 0)),
        ),
        compiler_params=pltpu.CompilerParams(
            dimension_semantics=("parallel",)),   # shard row tiles across v7x's 2 TCs
    )(z_in, zp_in, w1_bf, b1, w2_bf, b2, w3_row, b3)

    if B8 == B:
        # Contiguous reshape only -> metadata, no extra HBM pass.
        inter = h2_out.reshape(2 * B, 32)
        logit = logit_out.reshape(2 * B)
    else:
        inter = h2_out[:, :B, :].reshape(2 * B, 32)
        logit = logit_out[:, :B, 0].reshape(2 * B)
    return logit, inter


# ---------------- parameter setup (plain JAX glue) ----------------

def _spectral_norm(w, key, n_power_iterations=1, eps=1e-12):
    """PyTorch-style spectral norm on a (out, in) weight: one power iteration, W / sigma.
    TODO(synk): PyTorch keeps a persistent `u` buffer updated every forward; matching a
    trained checkpoint numerically would require loading that buffer instead of
    re-initializing `u` deterministically here."""
    out_dim, in_dim = w.shape
    u = jax.random.normal(key, (out_dim,), dtype=w.dtype)
    u = u / (jnp.linalg.norm(u) + eps)
    v = jnp.zeros((in_dim,), dtype=w.dtype)
    for _ in range(n_power_iterations):
        v = w.T @ u
        v = v / (jnp.linalg.norm(v) + eps)
        u = w @ v
        u = u / (jnp.linalg.norm(u) + eps)
    sigma = u @ (w @ v)
    return w / sigma


def make_params(latent_size, key):
    """Deterministic init; returns spectral-normalized weights.
    W1, W2 are transposed to (in, out); W3 is kept as a (1, 32) row (used on the VPU);
    biases are (1, out) rows."""
    keys = jax.random.split(key, 9)
    dims = [(64, latent_size), (32, 64), (1, 32)]  # PyTorch Linear: (out, in)
    params = []
    for i, (out_d, in_d) in enumerate(dims):
        bound = 1.0 / jnp.sqrt(in_d)
        w = jax.random.uniform(keys[3 * i], (out_d, in_d), jnp.float32, -bound, bound)
        b = jax.random.uniform(keys[3 * i + 1], (out_d,), jnp.float32, -bound, bound)
        w_sn = _spectral_norm(w, keys[3 * i + 2])
        if out_d == 1:
            params.append(w_sn)                # (1, 32) row for VPU layer 3
        else:
            params.append(w_sn.T)              # (in, out) for the MXU
        params.append(b.reshape(1, out_d))     # (1, out)
    return tuple(params)


def _reference_bf16(z, z_prime, params):
    """Pure-JAX reference on the same bf16/f32 precision path as the kernel."""
    w1, b1, w2, b2, w3_row, b3 = params
    x = jnp.concatenate([z, z_prime], axis=0).astype(jnp.bfloat16)
    h1 = _leaky_relu(jnp.dot(x, w1.astype(jnp.bfloat16),
                             preferred_element_type=jnp.float32) + b1)
    h2 = _leaky_relu(jnp.dot(h1.astype(jnp.bfloat16), w2.astype(jnp.bfloat16),
                             preferred_element_type=jnp.float32) + b2)
    h3 = _leaky_relu(jnp.sum(h2 * w3_row, axis=-1, keepdims=True) + b3)
    return h3.squeeze(-1), h2


def _reference_f32(z, z_prime, params):
    """Full-f32 reference (bounds the bf16 error of the kernel path)."""
    w1, b1, w2, b2, w3_row, b3 = params
    x = jnp.concatenate([z, z_prime], axis=0)
    h1 = _leaky_relu(x @ w1 + b1)
    h2 = _leaky_relu(h1 @ w2 + b2)
    h3 = _leaky_relu(h2 @ w3_row.T + b3)
    return h3[:, 0], h2


def _check(batch, latent_size, params, seed, **kwargs):
    z = jax.random.normal(jax.random.PRNGKey(seed), (batch, latent_size), jnp.float32)
    zp = jax.random.normal(jax.random.PRNGKey(seed + 1), (batch, latent_size), jnp.float32)
    logit, inter = discriminator_zz_forward(z, zp, params, **kwargs)
    jax.block_until_ready((logit, inter))
    assert logit.shape == (2 * batch,)
    assert inter.shape == (2 * batch, 32)
    # Same-precision-path reference (tight) + full-f32 reference (looser, bounds bf16 drift).
    rl_bf, ri_bf = _reference_bf16(z, zp, params)
    assert jnp.allclose(inter, ri_bf, atol=5e-3, rtol=5e-3)
    assert jnp.allclose(logit, rl_bf, atol=5e-3, rtol=5e-3)
    rl_f32, ri_f32 = _reference_f32(z, zp, params)
    assert jnp.allclose(inter, ri_f32, atol=3e-2, rtol=3e-2)
    assert jnp.allclose(logit, rl_f32, atol=3e-2, rtol=3e-2)


if __name__ == "__main__":
    latent_size = 32
    key = jax.random.PRNGKey(0)
    params = make_params(latent_size, jax.random.split(key, 1)[0])

    # Small primary case (batch=4): ragged -> padded to 8, grid=(1,).
    _check(4, latent_size, params, seed=10)
    # 8-aligned batch: no pad, tile=16, grid=(2,) -> exercises the multi-step parallel grid.
    _check(32, latent_size, params, seed=20)
    # Ragged multi-tile batch: padded to 24, tile=8, grid=(3,).
    _check(20, latent_size, params, seed=30, max_tile_m=8)

    print("KERNEL_OK")
</pallas_src>

<mosaic_0001>
module attributes {stable_mosaic.version = 11 : i64} {
  func.func @disc_zz_kernel(%arg0: i32, %arg1: memref<8x32xf32, #tpu.memory_space<vmem>>, %arg2: memref<8x32xf32, #tpu.memory_space<vmem>>, %arg3: memref<32x64xbf16, #tpu.memory_space<vmem>>, %arg4: memref<1x64xf32, #tpu.memory_space<vmem>>, %arg5: memref<64x32xbf16, #tpu.memory_space<vmem>>, %arg6: memref<1x32xf32, #tpu.memory_space<vmem>>, %arg7: memref<1x32xf32, #tpu.memory_space<vmem>>, %arg8: memref<1x1xf32, #tpu.memory_space<vmem>>, %arg9: memref<2x8x32xf32, #tpu.memory_space<vmem>>, %arg10: memref<2x8x1xf32, #tpu.memory_space<vmem>>) attributes {dimension_semantics = [#tpu.dimension_semantics<parallel>], iteration_bounds = array<i64: 1>, scalar_prefetch = 0 : i64, scratch_operands = 0 : i64, tpu.core_type = #tpu.core_type<tc>, window_params = [{transform_indices = @transform_0, window_bounds = array<i64: 8, 32>}, {transform_indices = @transform_1, window_bounds = array<i64: 8, 32>}, {pipeline_mode = #tpu.pipeline_mode<synchronous>, transform_indices = @transform_2, window_bounds = array<i64: 32, 64>}, {pipeline_mode = #tpu.pipeline_mode<synchronous>, transform_indices = @transform_3, window_bounds = array<i64: 1, 64>}, {pipeline_mode = #tpu.pipeline_mode<synchronous>, transform_indices = @transform_4, window_bounds = array<i64: 64, 32>}, {pipeline_mode = #tpu.pipeline_mode<synchronous>, transform_indices = @transform_5, window_bounds = array<i64: 1, 32>}, {pipeline_mode = #tpu.pipeline_mode<synchronous>, transform_indices = @transform_6, window_bounds = array<i64: 1, 32>}, {pipeline_mode = #tpu.pipeline_mode<synchronous>, transform_indices = @transform_7, window_bounds = array<i64: 1, 1>}, {transform_indices = @transform_8, window_bounds = array<i64: 2, 8, 32>}, {transform_indices = @transform_9, window_bounds = array<i64: 2, 8, 1>}]} {
    %c0 = arith.constant 0 : index
    %c0_0 = arith.constant 0 : index
    %0 = vector.load %arg1[%c0, %c0_0] : memref<8x32xf32, #tpu.memory_space<vmem>>, vector<8x32xf32>
    %c0_1 = arith.constant 0 : index
    %c0_2 = arith.constant 0 : index
    %1 = vector.load %arg2[%c0_1, %c0_2] : memref<8x32xf32, #tpu.memory_space<vmem>>, vector<8x32xf32>
    %2 = tpu.concatenate %0, %1 in 0 : vector<8x32xf32>, vector<8x32xf32> -> vector<16x32xf32>
    %3 = arith.truncf %2 : vector<16x32xf32> to vector<16x32xbf16>
    %c0_3 = arith.constant 0 : index
    %c0_4 = arith.constant 0 : index
    %4 = vector.load %arg3[%c0_3, %c0_4] : memref<32x64xbf16, #tpu.memory_space<vmem>>, vector<32x64xbf16>
    %cst = arith.constant dense<0.000000e+00> : vector<16x64xf32>
    %5 = tpu.matmul %3, %4, %cst {dimension_numbers = #tpu.dot_dimension_numbers<[1], [0], [0], [1], [0, 0, 1, 1], [], []>} : vector<16x32xbf16>, vector<32x64xbf16>, vector<16x64xf32> -> vector<16x64xf32>
    %c0_5 = arith.constant 0 : index
    %c0_6 = arith.constant 0 : index
    %6 = vector.load %arg4[%c0_5, %c0_6] : memref<1x64xf32, #tpu.memory_space<vmem>>, vector<1x64xf32>
    %7 = vector.broadcast %6 : vector<1x64xf32> to vector<16x64xf32>
    %8 = arith.addf %5, %7 : vector<16x64xf32>
    %cst_7 = arith.constant 0.000000e+00 : f32
    %9 = vector.broadcast %cst_7 : f32 to vector<16x64xf32>
    %10 = arith.cmpf ogt, %8, %9 : vector<16x64xf32>
    %cst_8 = arith.constant 2.000000e-01 : f32
    %11 = vector.broadcast %cst_8 : f32 to vector<16x64xf32>
    %12 = arith.mulf %11, %8 : vector<16x64xf32>
    %13 = arith.select %10, %8, %12 : vector<16x64xi1>, vector<16x64xf32>
    %14 = arith.truncf %13 : vector<16x64xf32> to vector<16x64xbf16>
    %c0_9 = arith.constant 0 : index
    %c0_10 = arith.constant 0 : index
    %15 = vector.load %arg5[%c0_9, %c0_10] : memref<64x32xbf16, #tpu.memory_space<vmem>>, vector<64x32xbf16>
    %cst_11 = arith.constant dense<0.000000e+00> : vector<16x32xf32>
    %16 = tpu.matmul %14, %15, %cst_11 {dimension_numbers = #tpu.dot_dimension_numbers<[1], [0], [0], [1], [0, 0, 1, 1], [], []>} : vector<16x64xbf16>, vector<64x32xbf16>, vector<16x32xf32> -> vector<16x32xf32>
    %c0_12 = arith.constant 0 : index
    %c0_13 = arith.constant 0 : index
    %17 = vector.load %arg6[%c0_12, %c0_13] : memref<1x32xf32, #tpu.memory_space<vmem>>, vector<1x32xf32>
    %18 = vector.broadcast %17 : vector<1x32xf32> to vector<16x32xf32>
    %19 = arith.addf %16, %18 : vector<16x32xf32>
    %cst_14 = arith.constant 0.000000e+00 : f32
    %20 = vector.broadcast %cst_14 : f32 to vector<16x32xf32>
    %21 = arith.cmpf ogt, %19, %20 : vector<16x32xf32>
    %cst_15 = arith.constant 2.000000e-01 : f32
    %22 = vector.broadcast %cst_15 : f32 to vector<16x32xf32>
    %23 = arith.mulf %22, %19 : vector<16x32xf32>
    %24 = arith.select %21, %19, %23 : vector<16x32xi1>, vector<16x32xf32>
    %c0_16 = arith.constant 0 : index
    %c0_17 = arith.constant 0 : index
    %25 = vector.load %arg7[%c0_16, %c0_17] : memref<1x32xf32, #tpu.memory_space<vmem>>, vector<1x32xf32>
    %26 = vector.broadcast %25 : vector<1x32xf32> to vector<16x32xf32>
    %27 = arith.mulf %24, %26 : vector<16x32xf32>
    %cst_18 = arith.constant dense<0.000000e+00> : vector<16xf32>
    %28 = vector.multi_reduction <add>, %27, %cst_18 [1] : vector<16x32xf32> to vector<16xf32>
    %29 = vector.shape_cast %28 : vector<16xf32> to vector<16x1xf32>
    %c0_19 = arith.constant 0 : index
    %c0_20 = arith.constant 0 : index
    %30 = vector.load %arg8[%c0_19, %c0_20] : memref<1x1xf32, #tpu.memory_space<vmem>>, vector<1x1xf32>
    %31 = vector.broadcast %30 : vector<1x1xf32> to vector<16x1xf32>
    %32 = arith.addf %29, %31 : vector<16x1xf32>
    %cst_21 = arith.constant 0.000000e+00 : f32
    %33 = vector.broadcast %cst_21 : f32 to vector<16x1xf32>
    %34 = arith.cmpf ogt, %32, %33 : vector<16x1xf32>
    %cst_22 = arith.constant 2.000000e-01 : f32
    %35 = vector.broadcast %cst_22 : f32 to vector<16x1xf32>
    %36 = arith.mulf %35, %32 : vector<16x1xf32>
    %37 = arith.select %34, %32, %36 : vector<16x1xi1>, vector<16x1xf32>
    %38 = vector.extract_strided_slice %24 {offsets = [0, 0], sizes = [8, 32], strides = [1, 1]} : vector<16x32xf32> to vector<8x32xf32>
    %c0_23 = arith.constant 0 : index
    %c0_24 = arith.constant 0 : index
    %c0_25 = arith.constant 0 : index
    %39 = vector.load %arg9[%c0_23, %c0_24, %c0_25] : memref<2x8x32xf32, #tpu.memory_space<vmem>>, vector<1x8x32xf32>
    %40 = vector.shape_cast %39 : vector<1x8x32xf32> to vector<8x32xf32>
    %41 = vector.shape_cast %38 : vector<8x32xf32> to vector<1x8x32xf32>
    tpu.vector_store %arg9[%c0_23, %c0_24, %c0_25], %41 {strides = array<i32>} : memref<2x8x32xf32, #tpu.memory_space<vmem>>, vector<1x8x32xf32>,
    %42 = vector.extract_strided_slice %24 {offsets = [8, 0], sizes = [8, 32], strides = [1, 1]} : vector<16x32xf32> to vector<8x32xf32>
    %c1 = arith.constant 1 : index
    %c0_26 = arith.constant 0 : index
    %c0_27 = arith.constant 0 : index
    %43 = vector.load %arg9[%c1, %c0_26, %c0_27] : memref<2x8x32xf32, #tpu.memory_space<vmem>>, vector<1x8x32xf32>
    %44 = vector.shape_cast %43 : vector<1x8x32xf32> to vector<8x32xf32>
    %45 = vector.shape_cast %42 : vector<8x32xf32> to vector<1x8x32xf32>
    tpu.vector_store %arg9[%c1, %c0_26, %c0_27], %45 {strides = array<i32>} : memref<2x8x32xf32, #tpu.memory_space<vmem>>, vector<1x8x32xf32>,
    %46 = vector.extract_strided_slice %37 {offsets = [0, 0], sizes = [8, 1], strides = [1, 1]} : vector<16x1xf32> to vector<8x1xf32>
    %c0_28 = arith.constant 0 : index
    %c0_29 = arith.constant 0 : index
    %c0_30 = arith.constant 0 : index
    %47 = vector.load %arg10[%c0_28, %c0_29, %c0_30] : memref<2x8x1xf32, #tpu.memory_space<vmem>>, vector<1x8x1xf32>
    %48 = vector.shape_cast %47 : vector<1x8x1xf32> to vector<8x1xf32>
    %49 = vector.shape_cast %46 : vector<8x1xf32> to vector<1x8x1xf32>
    tpu.vector_store %arg10[%c0_28, %c0_29, %c0_30], %49 {strides = array<i32>} : memref<2x8x1xf32, #tpu.memory_space<vmem>>, vector<1x8x1xf32>,
    %50 = vector.extract_strided_slice %37 {offsets = [8, 0], sizes = [8, 1], strides = [1, 1]} : vector<16x1xf32> to vector<8x1xf32>
    %c1_31 = arith.constant 1 : index
    %c0_32 = arith.constant 0 : index
    %c0_33 = arith.constant 0 : index
    %51 = vector.load %arg10[%c1_31, %c0_32, %c0_33] : memref<2x8x1xf32, #tpu.memory_space<vmem>>, vector<1x8x1xf32>
    %52 = vector.shape_cast %51 : vector<1x8x1xf32> to vector<8x1xf32>
    %53 = vector.shape_cast %50 : vector<8x1xf32> to vector<1x8x1xf32>
    tpu.vector_store %arg10[%c1_31, %c0_32, %c0_33], %53 {strides = array<i32>} : memref<2x8x1xf32, #tpu.memory_space<vmem>>, vector<1x8x1xf32>,
    return
  }
  func.func @transform_0(%arg0: i32) -> (i32, i32) {
    %c0_i32 = arith.constant 0 : i32
    %c0_i32_0 = arith.constant 0 : i32
    return %arg0, %c0_i32 : i32, i32
  }
  func.func @transform_1(%arg0: i32) -> (i32, i32) {
    %c0_i32 = arith.constant 0 : i32
    %c0_i32_0 = arith.constant 0 : i32
    return %arg0, %c0_i32 : i32, i32
  }
  func.func @transform_2(%arg0: i32) -> (i32, i32) {
    %c0_i32 = arith.constant 0 : i32
    %c0_i32_0 = arith.constant 0 : i32
    %c0_i32_1 = arith.constant 0 : i32
    return %c0_i32, %c0_i32_0 : i32, i32
  }
  func.func @transform_3(%arg0: i32) -> (i32, i32) {
    %c0_i32 = arith.constant 0 : i32
    %c0_i32_0 = arith.constant 0 : i32
    %c0_i32_1 = arith.constant 0 : i32
    return %c0_i32, %c0_i32_0 : i32, i32
  }
  func.func @transform_4(%arg0: i32) -> (i32, i32) {
    %c0_i32 = arith.constant 0 : i32
    %c0_i32_0 = arith.constant 0 : i32
    %c0_i32_1 = arith.constant 0 : i32
    return %c0_i32, %c0_i32_0 : i32, i32
  }
  func.func @transform_5(%arg0: i32) -> (i32, i32) {
    %c0_i32 = arith.constant 0 : i32
    %c0_i32_0 = arith.constant 0 : i32
    %c0_i32_1 = arith.constant 0 : i32
    return %c0_i32, %c0_i32_0 : i32, i32
  }
  func.func @transform_6(%arg0: i32) -> (i32, i32) {
    %c0_i32 = arith.constant 0 : i32
    %c0_i32_0 = arith.constant 0 : i32
    %c0_i32_1 = arith.constant 0 : i32
    return %c0_i32, %c0_i32_0 : i32, i32
  }
  func.func @transform_7(%arg0: i32) -> (i32, i32) {
    %c0_i32 = arith.constant 0 : i32
    %c0_i32_0 = arith.constant 0 : i32
    %c0_i32_1 = arith.constant 0 : i32
    return %c0_i32, %c0_i32_0 : i32, i32
  }
  func.func @transform_8(%arg0: i32) -> (i32, i32, i32) {
    %c0_i32 = arith.constant 0 : i32
    %c0_i32_0 = arith.constant 0 : i32
    %c0_i32_1 = arith.constant 0 : i32
    return %c0_i32, %arg0, %c0_i32_0 : i32, i32, i32
  }
  func.func @transform_9(%arg0: i32) -> (i32, i32, i32) {
    %c0_i32 = arith.constant 0 : i32
    %c0_i32_0 = arith.constant 0 : i32
    %c0_i32_1 = arith.constant 0 : i32
    return %c0_i32, %arg0, %c0_i32_0 : i32, i32, i32
  }
}

</mosaic_0001>

<llo_original>
// kernel: tpu_custom_call.1
$region0: #{tpu_custom_call.1}
  #allocation0 [shape = 'u32[]', space=smem, size = 0x4, offset = 0x4, fixed_abs, tag = 'smem constant byte address 0x4 - core index']
  #allocation1 [shape = 'u32[144,128]{1,0:T(1,128)}', space=vmem, size = 0x12000, scoped, tag = 'internal scratch']
  #allocation2 [shape = 'f32[1,1]{1,0:T(1,128)S(1)}', space=vmem, size = 0x200, scoped, tag = 'scoped memory for tpu_custom_call.1']
  %s0 = inlined_call_operand.vmem [shape: f32[8,32], index: 0, kind: input, shape index: {}]
  %s1 = inlined_call_operand.vmem [shape: f32[8,32], index: 1, kind: input, shape index: {}]
  %s2 = inlined_call_operand.vmem [shape: bf16[32,64], index: 2, kind: input, shape index: {}]
  %s3 = inlined_call_operand.vmem [shape: f32[1,64], index: 3, kind: input, shape index: {}]
  %s4 = inlined_call_operand.vmem [shape: bf16[64,32], index: 4, kind: input, shape index: {}]
  %s5 = inlined_call_operand.vmem [shape: f32[1,32], index: 5, kind: input, shape index: {}]
  %s6 = inlined_call_operand.vmem [shape: f32[1,32], index: 6, kind: input, shape index: {}]
  %s7 = inlined_call_operand.<no memory space> [shape: f32[1,1], index: 7, kind: input, shape index: {}]
  %s8 = inlined_call_operand.hbm [shape: f32[2,8,32], index: 8, kind: output, shape index: {0}]
  %s9 = inlined_call_operand.vmem [shape: f32[2,8,1], index: 9, kind: output, shape index: {1}]
  %10 = xla_tuple %s8, %s9
  %s11 = sld [smem:[#allocation0]]
  $region50: #{tpu_custom_call.1} parent=0
    _
  %s13 = ssub.s32 1, %s11
  %s14 = scalar_select 0, %s13, %s11
  %v15 = vstv %s7
  %16 = vst [vmem:[#allocation2] sm:$0x1] %v15
  $region1: #{tpu_custom_call.1} parent=0
    #allocation3 [shape = 'u8[8192]{0}', space=vmem, size = 0x2000, scoped, tag = 'output window, operand 0, single buffered']
    #allocation4 [shape = 's32[1]{0}', space=sflag, size = 0x4, scoped, tag = 'scoped memory for tpu_custom_call.1']
    %17 = vsyncpa [#allocation4], 0
    // Predicated region
    $region2: #{tpu_custom_call.1} parent=1 // pred_check
      _
    $region3: #{tpu_custom_call.1} parent=1 // pred_check_branch
      %19 = sbr.rel (0) target = $region5
    $region4: #{tpu_custom_call.1} parent=1 // pred_region
      _
    $region5: #{tpu_custom_call.1} parent=1 // pred_fallthru
      _
    // Predicated region
    $region6: #{tpu_custom_call.1} parent=1 // pred_check
      _
    $region7: #{tpu_custom_call.1} parent=1 // pred_check_branch
      %21 = sbr.rel (0) target = $region9
    $region8: #{tpu_custom_call.1} parent=1 // pred_region
      _
    $region9: #{tpu_custom_call.1} parent=1 // pred_fallthru
      _
    // Predicated region
    $region10: #{tpu_custom_call.1} parent=1 // pred_check
      _
    $region11: #{tpu_custom_call.1} parent=1 // pred_check_branch
      %23 = sbr.rel (0) target = $region13
    $region12: #{tpu_custom_call.1} parent=1 // pred_region
      _
    $region13: #{tpu_custom_call.1} parent=1 // pred_fallthru
      _
    // Predicated region
    $region14: #{tpu_custom_call.1} parent=1 // pred_check
      _
    $region15: #{tpu_custom_call.1} parent=1 // pred_check_branch
      %25 = sbr.rel (0) target = $region17
    $region16: #{tpu_custom_call.1} parent=1 // pred_region
      _
    $region17: #{tpu_custom_call.1} parent=1 // pred_fallthru
      _
    // Predicated region
    $region18: #{tpu_custom_call.1} parent=1 // pred_check
      _
    $region19: #{tpu_custom_call.1} parent=1 // pred_check_branch
      %27 = sbr.rel (0) target = $region21
    $region20: #{tpu_custom_call.1} parent=1 // pred_region
      _
    $region21: #{tpu_custom_call.1} parent=1 // pred_fallthru
      _
    // Predicated region
    $region22: #{tpu_custom_call.1} parent=1 // pred_check
      _
    $region23: #{tpu_custom_call.1} parent=1 // pred_check_branch
      %29 = sbr.rel (0) target = $region25
    $region24: #{tpu_custom_call.1} parent=1 // pred_region
      _
    $region25: #{tpu_custom_call.1} parent=1 // pred_fallthru
      _
    // Predicated region
    $region26: #{tpu_custom_call.1} parent=1 // pred_check
      _
    $region27: #{tpu_custom_call.1} parent=1 // pred_check_branch
      %31 = sbr.rel (0) target = $region29
    $region28: #{tpu_custom_call.1} parent=1 // pred_region
      _
    $region29: #{tpu_custom_call.1} parent=1 // pred_fallthru
      _
    // Predicated region
    $region30: #{tpu_custom_call.1} parent=1 // pred_check
      _
    $region31: #{tpu_custom_call.1} parent=1 // pred_check_branch
      %33 = sbr.rel (0) target = $region33
    $region32: #{tpu_custom_call.1} parent=1 // pred_region
      _
    $region33: #{tpu_custom_call.1} parent=1 // pred_fallthru
      _
    %v35 = vld [vmem:[%s0] sm:$0xff]
    %v36 = vld [vmem:[%s1] sm:$0xff]
    %v37 = vpack.c.bf16 %v36, %v35
    %v38 = vld [vmem:[%s2] sm:$0xf]
    %v39 = vld [vmem:[%s2 + $0x4] sm:$0xf]
    %v40 = vld [vmem:[%s2 + $0x8] sm:$0xf]
    %v41 = vld [vmem:[%s2 + $0xc] sm:$0xf]
    %v42 = vld [vmem:[%s3] sm:$0x1]
    %v44 = vlaneseq
    %v45 = vshrl.u32 %v44, 7
    %v46 = vsub.s32 0, %v45
    %v47 = vrot.slane %v42, %v46
    %v53 = vunpack.c.l.b16 %v38
    %v54 = vunpack.c.l.b16 %v39
    %v55 = vunpack.c.l.b16 %v40
    %v56 = vunpack.c.l.b16 %v41
    %v57 = vpack.c.b16 %v54, %v53
    %v58 = vpack.c.b16 %v56, %v55
    %vm61 = vcmask 261120
    %v63 = vsel %vm61, %v37, 0
    %65 = vmatprep.subr.bf16.mxu0 0
    %66 = vmatpush1.bf16.msra.mxu0 0
    %67 = vmatprep.subr.bf16.mxu0 0
    %68 = vmatpush1.bf16.msra.mxu0 0
    %69 = vmatprep.subr.bf16.mxu0 0
    %70 = vmatpush1.bf16.msra.mxu0 0
    %71 = vmatprep.subr.bf16.mxu0 0
    %72 = vmatpush1.bf16.msra.mxu0 0
    %73 = vmatprep.subr.bf16.mxu0 0
    %74 = vmatpush1.bf16.msra.mxu0 0
    %75 = vmatprep.subr.bf16.mxu0 0
    %76 = vmatpush1.bf16.msra.mxu0 0
    %77 = vmatprep.subr.bf16.mxu0 0
    %78 = vmatpush1.bf16.msra.mxu0 %v58
    %79 = vmatprep.subr.bf16.mxu0 0
    %80 = vmatpush1.bf16.msra.mxu0 %v57
    %81 = vmatprep.subr.bf16.mxu0 0
    %82 = vmatpush2.bf16.msra.mxu0 0
    %83 = vmatprep.subr.bf16.mxu0 0
    %84 = vmatpush2.bf16.msra.mxu0 0
    %85 = vmatprep.subr.bf16.mxu0 0
    %86 = vmatpush2.bf16.msra.mxu0 0
    %87 = vmatprep.subr.bf16.mxu0 0
    %88 = vmatpush2.bf16.msra.mxu0 0
    %89 = vmatprep.subr.bf16.mxu0 0
    %90 = vmatpush2.bf16.msra.mxu0 0
    %91 = vmatprep.subr.bf16.mxu0 0
    %92 = vmatpush2.bf16.msra.mxu0 0
    %93 = vmatprep.subr.bf16.mxu0 0
    %94 = vmatpush2.bf16.msra.mxu0 0
    %95 = vmatprep.subr.bf16.mxu0 0
    %96 = vmatpush2.bf16.msra.mxu0 0
    %97 = vmatprep.mubr.bf16.mxu0 0
    %98 = vmatmul.mubr.bf16.gmra.mxu0 %v63
    %v99 = vpop.f32.mrf.mxu0
    %v100 = vadd.f32 %v47, %v99
    %v101 = vpop.f32.mrf.mxu0
    %v102 = vpop.f32.mrf.mxu0
    %v103 = vadd.f32 %v47, %v102
    %v104 = vpop.f32.mrf.mxu0
    %105 = vdwg.mxu0
    %vm106 = vcmp.gt.f32.partialorder %v100, 0.0
    %vm107 = vcmp.gt.f32.partialorder %v103, 0.0
    %v108 = vmul.f32 %v100, 0.2
    %v109 = vmul.f32 %v103, 0.2
    %v110 = vsel %vm106, %v100, %v108
    %v111 = vsel %vm107, %v103, %v109
    %v112 = vpack.c.bf16 %v111, %v110
    %v113 = vld [vmem:[%s4] sm:$0xf]
    %v114 = vld [vmem:[%s4 + $0x4] sm:$0xf]
    %v115 = vld [vmem:[%s4 + $0x8] sm:$0xf]
    %v116 = vld [vmem:[%s4 + $0xc] sm:$0xf]
    %v117 = vld [vmem:[%s4 + $0x10] sm:$0xf]
    %v118 = vld [vmem:[%s4 + $0x14] sm:$0xf]
    %v119 = vld [vmem:[%s4 + $0x18] sm:$0xf]
    %v120 = vld [vmem:[%s4 + $0x1c] sm:$0xf]
    %v121 = vld [vmem:[%s5] sm:$0x1]
    %v123 = vlaneseq
    %v124 = vshrl.u32 %v123, 7
    %v125 = vsub.s32 0, %v124
    %v126 = vrot.slane %v121, %v125
    %v136 = vunpack.c.l.b16 %v113
    %v137 = vunpack.c.l.b16 %v114
    %v138 = vunpack.c.l.b16 %v115
    %v139 = vunpack.c.l.b16 %v116
    %v140 = vunpack.c.l.b16 %v117
    %v141 = vunpack.c.l.b16 %v118
    %v142 = vunpack.c.l.b16 %v119
    %v143 = vunpack.c.l.b16 %v120
    %v144 = vpack.c.b16 %v137, %v136
    %v145 = vpack.c.b16 %v139, %v138
    %v146 = vpack.c.b16 %v141, %v140
    %v147 = vpack.c.b16 %v143, %v142
    %vm152 = vcmask 523264
    %v154 = vsel %vm152, %v112, 0
    %156 = vmatprep.subr.bf16.mxu0 0
    %157 = vmatpush1.bf16.msra.mxu0 0
    %158 = vmatprep.subr.bf16.mxu0 0
    %159 = vmatpush1.bf16.msra.mxu0 0
    %160 = vmatprep.subr.bf16.mxu0 0
    %161 = vmatpush1.bf16.msra.mxu0 0
    %162 = vmatprep.subr.bf16.mxu0 0
    %163 = vmatpush1.bf16.msra.mxu0 0
    %164 = vmatprep.subr.bf16.mxu0 0
    %165 = vmatpush1.bf16.msra.mxu0 %v147
    %166 = vmatprep.subr.bf16.mxu0 0
    %167 = vmatpush1.bf16.msra.mxu0 %v146
    %168 = vmatprep.subr.bf16.mxu0 0
    %169 = vmatpush1.bf16.msra.mxu0 %v145
    %170 = vmatprep.subr.bf16.mxu0 0
    %171 = vmatpush1.bf16.msra.mxu0 %v144
    %172 = vmatprep.subr.bf16.mxu0 0
    %173 = vmatpush2.bf16.msra.mxu0 0
    %174 = vmatprep.subr.bf16.mxu0 0
    %175 = vmatpush2.bf16.msra.mxu0 0
    %176 = vmatprep.subr.bf16.mxu0 0
    %177 = vmatpush2.bf16.msra.mxu0 0
    %178 = vmatprep.subr.bf16.mxu0 0
    %179 = vmatpush2.bf16.msra.mxu0 0
    %180 = vmatprep.subr.bf16.mxu0 0
    %181 = vmatpush2.bf16.msra.mxu0 0
    %182 = vmatprep.subr.bf16.mxu0 0
    %183 = vmatpush2.bf16.msra.mxu0 0
    %184 = vmatprep.subr.bf16.mxu0 0
    %185 = vmatpush2.bf16.msra.mxu0 0
    %186 = vmatprep.subr.bf16.mxu0 0
    %187 = vmatpush2.bf16.msra.mxu0 0
    %188 = vmatprep.mubr.bf16.mxu0 0
    %189 = vmatmul.mubr.bf16.gmra.mxu0 %v154
    %v190 = vpop.f32.mrf.mxu0
    %v191 = vadd.f32 %v126, %v190
    %v192 = vpop.f32.mrf.mxu0
    %v193 = vpop.f32.mrf.mxu0
    %v194 = vadd.f32 %v126, %v193
    %v195 = vpop.f32.mrf.mxu0
    %196 = vdwg.mxu0
    %vm197 = vcmp.gt.f32.partialorder %v191, 0.0
    %vm198 = vcmp.gt.f32.partialorder %v194, 0.0
    %v199 = vmul.f32 %v191, 0.2
    %v200 = vmul.f32 %v194, 0.2
    %v201 = vsel %vm197, %v191, %v199
    %v202 = vsel %vm198, %v194, %v200
    %v203 = vld [vmem:[%s6] sm:$0x1]
    %v205 = vlaneseq
    %v206 = vshrl.u32 %v205, 7
    %v207 = vsub.s32 0, %v206
    %v208 = vrot.slane %v203, %v207
    %v210 = vmul.f32 %v201, %v208
    %v211 = vmul.f32 %v202, %v208
    %v212 = vsel %vm61, %v210, 0.0
    %213 = vadd.xlane.f32.xlu0 %v212
    %v214 = vpop.xlane.xlu0 %213
    %v215 = vsel %vm61, %v211, 0.0
    %216 = vadd.xlane.f32.xlu0 %v215
    %v217 = vpop.xlane.xlu0 %216
    %v218 = vld [vmem:[#allocation2] sm:$0x1]
    %v220 = vlaneseq
    %v221 = vshrl.u32 %v220, 7
    %v222 = vsub.s32 0, %v221
    %v223 = vrot.slane %v218, %v222
    %v225 = vadd.f32 %v214, %v223
    %v226 = vadd.f32 %v217, %v223
    %vm227 = vcmp.gt.f32.partialorder %v225, 0.0
    %vm228 = vcmp.gt.f32.partialorder %v226, 0.0
    %v229 = vmul.f32 %v225, 0.2
    %v230 = vmul.f32 %v226, 0.2
    %v231 = vsel %vm227, %v225, %v229
    %v232 = vsel %vm228, %v226, %v230
    %233 = vst.msk [vmem:[#allocation3] sm:$0xff] %vm61, %v201
    %s234 = scalar_lea.vmem [#allocation3], 8
    %235 = vst.msk [vmem:[%s234] sm:$0xff] %vm61, %v202
    %vm236 = vcmask 7168
    %237 = vst.msk [vmem:[%s9] sm:$0xff] %vm236, %v231
    %s238 = scalar_lea.vmem %s9, 8
    %239 = vst.msk [vmem:[%s238] sm:$0xff] %vm236, %v232
    // Predicated region
    $region34: #{tpu_custom_call.1} parent=1 // pred_check
      _
    $region35: #{tpu_custom_call.1} parent=1 // pred_check_branch
      %241 = sbr.rel (0) target = $region37
    $region36: #{tpu_custom_call.1} parent=1 // pred_region
      %s243 = ssub.s32 256, 256
      %244 = vsyncadd [#allocation4], %s243
      %s245 = sshll.u32 [#allocation3], 4
      %s246 = int_to_ptr.vmem [resolvable:$true] %s245
      %251 = dma.vmem_to_hbm [thread:$0]  %s246, 256, %s8, [#allocation4], 128, 128, 8
    $region37: #{tpu_custom_call.1} parent=1 // pred_fallthru
      _
    // Predicated region
    $region38: #{tpu_custom_call.1} parent=1 // pred_check
      _
    $region39: #{tpu_custom_call.1} parent=1 // pred_check_branch
      %253 = sbr.rel (0) target = $region41
    $region40: #{tpu_custom_call.1} parent=1 // pred_region
      _
    $region41: #{tpu_custom_call.1} parent=1 // pred_fallthru
      _
    // Predicated region
    $region42: #{tpu_custom_call.1} parent=1 // pred_check
      _
    $region43: #{tpu_custom_call.1} parent=1 // pred_check_branch
      %255 = sbr.rel (0) target = $region45
    $region44: #{tpu_custom_call.1} parent=1 // pred_region
      %256 = dma.done [#allocation4], 256
    $region45: #{tpu_custom_call.1} parent=1 // pred_fallthru
      _
    // Predicated region
    $region46: #{tpu_custom_call.1} parent=1 // pred_check
      _
    $region47: #{tpu_custom_call.1} parent=1 // pred_check_branch
      %258 = sbr.rel (0) target = $region49
    $region48: #{tpu_custom_call.1} parent=1 // pred_region
      _
    $region49: #{tpu_custom_call.1} parent=1 // pred_fallthru
      _
    %259 = vsyncpa [#allocation4], 1

</llo_original>
